<compile_context>
chip_gen: v7x
topology: tpu7x:2x2x1
jax: 0.10.0
libtpu: 0.0.40
codegen_flags: <defaults>
</compile_context>

<pallas_src>
import jax
import jax.numpy as jnp
from jax.experimental import pallas as pl
from jax.experimental.pallas import tpu as pltpu


# ----------------------------- Pallas kernel --------------------------------
def _make_seconv_kernel(*, W, KH, KW, P, Cout, HW, conv_dtype):
    def kernel(x_ref, wtaps_ref, bconv_ref, masks_ref, w1t_ref, w2_ref, out_ref):
        # x_ref     : (1, Cin, Lpad)   H-padded flattened image, +P zero cols front/back
        # wtaps_ref : (KH*KW, Cout, Cin)  per-tap conv weights
        # bconv_ref : (Cout, 1)
        # masks_ref : (KW, HW)         column-validity mask per kw tap (0/1)
        # w1t_ref   : (Cout, Cred)     fc1 weight transposed
        # w2_ref    : (Cout, Cred)     fc2 weight
        # out_ref   : (1, Cout, HW)    lane-dense output (HW on the lane axis)
        x = x_ref[0]                                   # (Cin, Lpad)
        wtaps = wtaps_ref[...]                         # (KH*KW, Cout, Cin)
        masks = masks_ref[...]                         # (KW, HW)

        # Convolution as 9 shifted (Cout,Cin)@(Cin,HW) matmuls, f32 accumulation.
        acc = jnp.zeros((Cout, HW), jnp.float32)
        for ki in range(KH):
            for kj in range(KW):
                start = P + ki * W + (kj - P)          # static slice offset
                xt = x[:, start:start + HW]            # (Cin, HW)
                if kj != P:                            # zero W-wraparound reads
                    xt = xt * masks[kj:kj + 1, :]
                wt = wtaps[ki * KW + kj]               # (Cout, Cin)
                acc = acc + jnp.dot(wt.astype(conv_dtype), xt.astype(conv_dtype),
                                    preferred_element_type=jnp.float32)

        conv = acc + bconv_ref[...]                    # (Cout, HW) + (Cout, 1)

        # Squeeze: global average pool = lane reduce (XLU).
        y = jnp.mean(conv, axis=1, keepdims=True)      # (Cout, 1)
        # Excite on VPU/XLU (no MXU, no transposes):
        #   h[r] = relu(sum_c fc1_w[r,c] * y[c])      -> sublane reduce
        h = jnp.maximum(jnp.sum(w1t_ref[...] * y, axis=0, keepdims=True), 0.0)  # (1, Cred)
        #   s[c] = sigmoid(sum_r fc2_w[c,r] * h[r])   -> lane reduce, sigmoid on EUP
        s = jax.nn.sigmoid(jnp.sum(w2_ref[...] * h, axis=1, keepdims=True))     # (Cout, 1)

        # Scale: broadcast channel gates over all spatial positions (lane-dense store).
        out_ref[0] = conv * s
    return kernel


# ----------------------------- Wrapper (glue) --------------------------------
def seconv_forward(x_nchw, conv_w, conv_b, fc1_w, fc2_w, *, padding=1,
                   conv_dtype=jnp.float32):
    """
    x_nchw : (B, Cin, H, W)   float32
    conv_w : (Cout, Cin, KH, KW)
    conv_b : (Cout,)
    fc1_w  : (Cred, Cout)   (PyTorch Linear weight layout: out_features x in_features)
    fc2_w  : (Cout, Cred)
    returns (B, Cout, H, W)
    """
    B, Cin, H, W = x_nchw.shape
    Cout, Cin_w, KH, KW = conv_w.shape
    assert Cin_w == Cin
    Cred = fc1_w.shape[0]
    P = padding
    assert KH == KW and KH % 2 == 1 and P == (KH - 1) // 2, \
        "kernel supports stride-1 'same' odd-sized convolutions"
    HW = H * W
    Lpad = 2 * P + (H + 2 * P) * W

    x = x_nchw.astype(jnp.float32)
    # Pad only along H; W-border handled in-kernel with masks. HBM traffic is
    # ~(1 + 2P/H)x the input instead of KH*KW x for an im2col patches tensor.
    xp = jnp.pad(x, ((0, 0), (0, 0), (P, P), (0, 0)))              # (B, Cin, H+2P, W)
    xflat = xp.reshape(B, Cin, (H + 2 * P) * W)
    xbig = jnp.pad(xflat, ((0, 0), (0, 0), (P, P)))                # (B, Cin, Lpad)

    # Per-tap conv weights: wtaps[ki*KW+kj, co, ci] = conv_w[co, ci, ki, kj]
    wtaps = jnp.transpose(conv_w, (2, 3, 0, 1)).reshape(KH * KW, Cout, Cin)
    wtaps = wtaps.astype(jnp.float32)
    bconv = conv_b.reshape(Cout, 1).astype(jnp.float32)

    # Column-validity masks per kw tap (zero out flattened W-wraparound reads).
    w_idx = jnp.arange(HW, dtype=jnp.int32) % W
    masks = jnp.stack(
        [((w_idx + (kj - P) >= 0) & (w_idx + (kj - P) < W)).astype(jnp.float32)
         for kj in range(KW)], axis=0)                              # (KW, HW)

    w1t = jnp.transpose(fc1_w).astype(jnp.float32)                  # (Cout, Cred)
    w2 = fc2_w.astype(jnp.float32)                                  # (Cout, Cred)

    kernel = _make_seconv_kernel(W=W, KH=KH, KW=KW, P=P, Cout=Cout,
                                 HW=HW, conv_dtype=conv_dtype)

    out = pl.pallas_call(
        kernel,
        out_shape=jax.ShapeDtypeStruct((B, Cout, HW), jnp.float32),
        grid_spec=pltpu.PrefetchScalarGridSpec(
            num_scalar_prefetch=0,
            grid=(B,),
            in_specs=[
                pl.BlockSpec((1, Cin, Lpad), lambda b: (b, 0, 0)),
                pl.BlockSpec((KH * KW, Cout, Cin), lambda b: (0, 0, 0)),
                pl.BlockSpec((Cout, 1), lambda b: (0, 0)),
                pl.BlockSpec((KW, HW), lambda b: (0, 0)),
                pl.BlockSpec((Cout, Cred), lambda b: (0, 0)),
                pl.BlockSpec((Cout, Cred), lambda b: (0, 0)),
            ],
            out_specs=pl.BlockSpec((1, Cout, HW), lambda b: (b, 0, 0)),
        ),
        compiler_params=pltpu.CompilerParams(
            dimension_semantics=("parallel",)),
    )(xbig, wtaps, bconv, masks, w1t, w2)

    # (B, Cout, HW) is already NCHW-flattened: plain reshape, no transpose.
    return out.reshape(B, Cout, H, W)


# ----------------------------- Pure-JAX reference ----------------------------
def seconv_reference(x_nchw, conv_w, conv_b, fc1_w, fc2_w, *, padding=1):
    conv = jax.lax.conv_general_dilated(
        x_nchw, conv_w, window_strides=(1, 1),
        padding=[(padding, padding), (padding, padding)],
        dimension_numbers=("NCHW", "OIHW", "NCHW"))
    conv = conv + conv_b[None, :, None, None]
    y = jnp.mean(conv, axis=(2, 3))                       # (B, Cout)
    h = jnp.maximum(y @ fc1_w.T, 0.0)
    s = jax.nn.sigmoid(h @ fc2_w.T)
    return conv * s[:, :, None, None]


# ----------------------------------- Main ------------------------------------
if __name__ == "__main__":
    # Shapes consistent with SEConv(moduleconv=Conv2d(4, 8, 3, padding=1), reduction=16)
    # out_channels=8, reduction=16 -> 8 // 16 == 0 -> reduction = 8 // 2 = 4 -> Cred = 2
    B, Cin, H, W = 2, 4, 16, 16
    Cout, KH, KW = 8, 3, 3
    reduction = 16
    if Cout // reduction == 0:
        reduction = Cout // 2
    Cred = Cout // reduction

    key = jax.random.PRNGKey(0)
    kx, kw, kb, k1, k2 = jax.random.split(key, 5)
    x = jax.random.normal(kx, (B, Cin, H, W), dtype=jnp.float32)
    conv_w = 0.1 * jax.random.normal(kw, (Cout, Cin, KH, KW), dtype=jnp.float32)
    conv_b = 0.1 * jax.random.normal(kb, (Cout,), dtype=jnp.float32)
    fc1_w = 0.1 * jax.random.normal(k1, (Cred, Cout), dtype=jnp.float32)  # Linear(Cout -> Cred), bias=False
    fc2_w = 0.1 * jax.random.normal(k2, (Cout, Cred), dtype=jnp.float32)  # Linear(Cred -> Cout), bias=False

    out = seconv_forward(x, conv_w, conv_b, fc1_w, fc2_w, padding=1)
    out = jax.block_until_ready(out)

    ref = seconv_reference(x, conv_w, conv_b, fc1_w, fc2_w, padding=1)
    ref = jax.block_until_ready(ref)

    assert out.shape == (B, Cout, H, W), out.shape
    assert jnp.allclose(out, ref, rtol=1e-4, atol=1e-4), float(jnp.max(jnp.abs(out - ref)))
    print("KERNEL_OK")
</pallas_src>

<mosaic_0001>
module attributes {stable_mosaic.version = 11 : i64} {
  func.func @kernel(%arg0: i32, %arg1: memref<1x4x290xf32, #tpu.memory_space<vmem>>, %arg2: memref<9x8x4xf32, #tpu.memory_space<vmem>>, %arg3: memref<8x1xf32, #tpu.memory_space<vmem>>, %arg4: memref<3x256xf32, #tpu.memory_space<vmem>>, %arg5: memref<8x2xf32, #tpu.memory_space<vmem>>, %arg6: memref<8x2xf32, #tpu.memory_space<vmem>>, %arg7: memref<1x8x256xf32, #tpu.memory_space<vmem>>) attributes {dimension_semantics = [#tpu.dimension_semantics<parallel>], iteration_bounds = array<i64: 2>, scalar_prefetch = 0 : i64, scratch_operands = 0 : i64, tpu.core_type = #tpu.core_type<tc>, window_params = [{transform_indices = @transform_0, window_bounds = array<i64: 1, 4, 290>}, {pipeline_mode = #tpu.pipeline_mode<synchronous>, transform_indices = @transform_1, window_bounds = array<i64: 9, 8, 4>}, {pipeline_mode = #tpu.pipeline_mode<synchronous>, transform_indices = @transform_2, window_bounds = array<i64: 8, 1>}, {pipeline_mode = #tpu.pipeline_mode<synchronous>, transform_indices = @transform_3, window_bounds = array<i64: 3, 256>}, {pipeline_mode = #tpu.pipeline_mode<synchronous>, transform_indices = @transform_4, window_bounds = array<i64: 8, 2>}, {pipeline_mode = #tpu.pipeline_mode<synchronous>, transform_indices = @transform_5, window_bounds = array<i64: 8, 2>}, {transform_indices = @transform_6, window_bounds = array<i64: 1, 8, 256>}]} {
    %c0 = arith.constant 0 : index
    %c0_0 = arith.constant 0 : index
    %c0_1 = arith.constant 0 : index
    %0 = vector.load %arg1[%c0, %c0_0, %c0_1] : memref<1x4x290xf32, #tpu.memory_space<vmem>>, vector<1x4x290xf32>
    %1 = vector.shape_cast %0 : vector<1x4x290xf32> to vector<4x290xf32>
    %c0_2 = arith.constant 0 : index
    %c0_3 = arith.constant 0 : index
    %c0_4 = arith.constant 0 : index
    %2 = vector.load %arg2[%c0_2, %c0_3, %c0_4] : memref<9x8x4xf32, #tpu.memory_space<vmem>>, vector<9x8x4xf32>
    %c0_5 = arith.constant 0 : index
    %c0_6 = arith.constant 0 : index
    %3 = vector.load %arg4[%c0_5, %c0_6] : memref<3x256xf32, #tpu.memory_space<vmem>>, vector<3x256xf32>
    %cst = arith.constant 0.000000e+00 : f32
    %4 = vector.broadcast %cst : f32 to vector<8x256xf32>
    %5 = vector.extract_strided_slice %1 {offsets = [0, 0], sizes = [4, 256], strides = [1, 1]} : vector<4x290xf32> to vector<4x256xf32>
    %6 = vector.extract_strided_slice %3 {offsets = [0, 0], sizes = [1, 256], strides = [1, 1]} : vector<3x256xf32> to vector<1x256xf32>
    %7 = vector.broadcast %6 : vector<1x256xf32> to vector<4x256xf32>
    %8 = arith.mulf %5, %7 : vector<4x256xf32>
    %9 = vector.extract_strided_slice %2 {offsets = [0, 0, 0], sizes = [1, 8, 4], strides = [1, 1, 1]} : vector<9x8x4xf32> to vector<1x8x4xf32>
    %10 = vector.shape_cast %9 : vector<1x8x4xf32> to vector<8x4xf32>
    %cst_7 = arith.constant dense<0.000000e+00> : vector<8x256xf32>
    %11 = tpu.matmul %10, %8, %cst_7 {dimension_numbers = #tpu.dot_dimension_numbers<[1], [0], [0], [1], [0, 0, 1, 1], [], []>} : vector<8x4xf32>, vector<4x256xf32>, vector<8x256xf32> -> vector<8x256xf32>
    %12 = arith.addf %4, %11 : vector<8x256xf32>
    %13 = vector.extract_strided_slice %1 {offsets = [0, 1], sizes = [4, 256], strides = [1, 1]} : vector<4x290xf32> to vector<4x256xf32>
    %14 = vector.extract_strided_slice %2 {offsets = [1, 0, 0], sizes = [1, 8, 4], strides = [1, 1, 1]} : vector<9x8x4xf32> to vector<1x8x4xf32>
    %15 = vector.shape_cast %14 : vector<1x8x4xf32> to vector<8x4xf32>
    %cst_8 = arith.constant dense<0.000000e+00> : vector<8x256xf32>
    %16 = tpu.matmul %15, %13, %cst_8 {dimension_numbers = #tpu.dot_dimension_numbers<[1], [0], [0], [1], [0, 0, 1, 1], [], []>} : vector<8x4xf32>, vector<4x256xf32>, vector<8x256xf32> -> vector<8x256xf32>
    %17 = arith.addf %12, %16 : vector<8x256xf32>
    %18 = vector.extract_strided_slice %1 {offsets = [0, 2], sizes = [4, 256], strides = [1, 1]} : vector<4x290xf32> to vector<4x256xf32>
    %19 = vector.extract_strided_slice %3 {offsets = [2, 0], sizes = [1, 256], strides = [1, 1]} : vector<3x256xf32> to vector<1x256xf32>
    %20 = vector.broadcast %19 : vector<1x256xf32> to vector<4x256xf32>
    %21 = arith.mulf %18, %20 : vector<4x256xf32>
    %22 = vector.extract_strided_slice %2 {offsets = [2, 0, 0], sizes = [1, 8, 4], strides = [1, 1, 1]} : vector<9x8x4xf32> to vector<1x8x4xf32>
    %23 = vector.shape_cast %22 : vector<1x8x4xf32> to vector<8x4xf32>
    %cst_9 = arith.constant dense<0.000000e+00> : vector<8x256xf32>
    %24 = tpu.matmul %23, %21, %cst_9 {dimension_numbers = #tpu.dot_dimension_numbers<[1], [0], [0], [1], [0, 0, 1, 1], [], []>} : vector<8x4xf32>, vector<4x256xf32>, vector<8x256xf32> -> vector<8x256xf32>
    %25 = arith.addf %17, %24 : vector<8x256xf32>
    %26 = vector.extract_strided_slice %1 {offsets = [0, 16], sizes = [4, 256], strides = [1, 1]} : vector<4x290xf32> to vector<4x256xf32>
    %27 = vector.extract_strided_slice %3 {offsets = [0, 0], sizes = [1, 256], strides = [1, 1]} : vector<3x256xf32> to vector<1x256xf32>
    %28 = vector.broadcast %27 : vector<1x256xf32> to vector<4x256xf32>
    %29 = arith.mulf %26, %28 : vector<4x256xf32>
    %30 = vector.extract_strided_slice %2 {offsets = [3, 0, 0], sizes = [1, 8, 4], strides = [1, 1, 1]} : vector<9x8x4xf32> to vector<1x8x4xf32>
    %31 = vector.shape_cast %30 : vector<1x8x4xf32> to vector<8x4xf32>
    %cst_10 = arith.constant dense<0.000000e+00> : vector<8x256xf32>
    %32 = tpu.matmul %31, %29, %cst_10 {dimension_numbers = #tpu.dot_dimension_numbers<[1], [0], [0], [1], [0, 0, 1, 1], [], []>} : vector<8x4xf32>, vector<4x256xf32>, vector<8x256xf32> -> vector<8x256xf32>
    %33 = arith.addf %25, %32 : vector<8x256xf32>
    %34 = vector.extract_strided_slice %1 {offsets = [0, 17], sizes = [4, 256], strides = [1, 1]} : vector<4x290xf32> to vector<4x256xf32>
    %35 = vector.extract_strided_slice %2 {offsets = [4, 0, 0], sizes = [1, 8, 4], strides = [1, 1, 1]} : vector<9x8x4xf32> to vector<1x8x4xf32>
    %36 = vector.shape_cast %35 : vector<1x8x4xf32> to vector<8x4xf32>
    %cst_11 = arith.constant dense<0.000000e+00> : vector<8x256xf32>
    %37 = tpu.matmul %36, %34, %cst_11 {dimension_numbers = #tpu.dot_dimension_numbers<[1], [0], [0], [1], [0, 0, 1, 1], [], []>} : vector<8x4xf32>, vector<4x256xf32>, vector<8x256xf32> -> vector<8x256xf32>
    %38 = arith.addf %33, %37 : vector<8x256xf32>
    %39 = vector.extract_strided_slice %1 {offsets = [0, 18], sizes = [4, 256], strides = [1, 1]} : vector<4x290xf32> to vector<4x256xf32>
    %40 = vector.extract_strided_slice %3 {offsets = [2, 0], sizes = [1, 256], strides = [1, 1]} : vector<3x256xf32> to vector<1x256xf32>
    %41 = vector.broadcast %40 : vector<1x256xf32> to vector<4x256xf32>
    %42 = arith.mulf %39, %41 : vector<4x256xf32>
    %43 = vector.extract_strided_slice %2 {offsets = [5, 0, 0], sizes = [1, 8, 4], strides = [1, 1, 1]} : vector<9x8x4xf32> to vector<1x8x4xf32>
    %44 = vector.shape_cast %43 : vector<1x8x4xf32> to vector<8x4xf32>
    %cst_12 = arith.constant dense<0.000000e+00> : vector<8x256xf32>
    %45 = tpu.matmul %44, %42, %cst_12 {dimension_numbers = #tpu.dot_dimension_numbers<[1], [0], [0], [1], [0, 0, 1, 1], [], []>} : vector<8x4xf32>, vector<4x256xf32>, vector<8x256xf32> -> vector<8x256xf32>
    %46 = arith.addf %38, %45 : vector<8x256xf32>
    %47 = vector.extract_strided_slice %1 {offsets = [0, 32], sizes = [4, 256], strides = [1, 1]} : vector<4x290xf32> to vector<4x256xf32>
    %48 = vector.extract_strided_slice %3 {offsets = [0, 0], sizes = [1, 256], strides = [1, 1]} : vector<3x256xf32> to vector<1x256xf32>
    %49 = vector.broadcast %48 : vector<1x256xf32> to vector<4x256xf32>
    %50 = arith.mulf %47, %49 : vector<4x256xf32>
    %51 = vector.extract_strided_slice %2 {offsets = [6, 0, 0], sizes = [1, 8, 4], strides = [1, 1, 1]} : vector<9x8x4xf32> to vector<1x8x4xf32>
    %52 = vector.shape_cast %51 : vector<1x8x4xf32> to vector<8x4xf32>
    %cst_13 = arith.constant dense<0.000000e+00> : vector<8x256xf32>
    %53 = tpu.matmul %52, %50, %cst_13 {dimension_numbers = #tpu.dot_dimension_numbers<[1], [0], [0], [1], [0, 0, 1, 1], [], []>} : vector<8x4xf32>, vector<4x256xf32>, vector<8x256xf32> -> vector<8x256xf32>
    %54 = arith.addf %46, %53 : vector<8x256xf32>
    %55 = vector.extract_strided_slice %1 {offsets = [0, 33], sizes = [4, 256], strides = [1, 1]} : vector<4x290xf32> to vector<4x256xf32>
    %56 = vector.extract_strided_slice %2 {offsets = [7, 0, 0], sizes = [1, 8, 4], strides = [1, 1, 1]} : vector<9x8x4xf32> to vector<1x8x4xf32>
    %57 = vector.shape_cast %56 : vector<1x8x4xf32> to vector<8x4xf32>
    %cst_14 = arith.constant dense<0.000000e+00> : vector<8x256xf32>
    %58 = tpu.matmul %57, %55, %cst_14 {dimension_numbers = #tpu.dot_dimension_numbers<[1], [0], [0], [1], [0, 0, 1, 1], [], []>} : vector<8x4xf32>, vector<4x256xf32>, vector<8x256xf32> -> vector<8x256xf32>
    %59 = arith.addf %54, %58 : vector<8x256xf32>
    %60 = vector.extract_strided_slice %1 {offsets = [0, 34], sizes = [4, 256], strides = [1, 1]} : vector<4x290xf32> to vector<4x256xf32>
    %61 = vector.extract_strided_slice %3 {offsets = [2, 0], sizes = [1, 256], strides = [1, 1]} : vector<3x256xf32> to vector<1x256xf32>
    %62 = vector.broadcast %61 : vector<1x256xf32> to vector<4x256xf32>
    %63 = arith.mulf %60, %62 : vector<4x256xf32>
    %64 = vector.extract_strided_slice %2 {offsets = [8, 0, 0], sizes = [1, 8, 4], strides = [1, 1, 1]} : vector<9x8x4xf32> to vector<1x8x4xf32>
    %65 = vector.shape_cast %64 : vector<1x8x4xf32> to vector<8x4xf32>
    %cst_15 = arith.constant dense<0.000000e+00> : vector<8x256xf32>
    %66 = tpu.matmul %65, %63, %cst_15 {dimension_numbers = #tpu.dot_dimension_numbers<[1], [0], [0], [1], [0, 0, 1, 1], [], []>} : vector<8x4xf32>, vector<4x256xf32>, vector<8x256xf32> -> vector<8x256xf32>
    %67 = arith.addf %59, %66 : vector<8x256xf32>
    %c0_16 = arith.constant 0 : index
    %c0_17 = arith.constant 0 : index
    %68 = vector.load %arg3[%c0_16, %c0_17] : memref<8x1xf32, #tpu.memory_space<vmem>>, vector<8x1xf32>
    %69 = vector.broadcast %68 : vector<8x1xf32> to vector<8x256xf32>
    %70 = arith.addf %67, %69 : vector<8x256xf32>
    %cst_18 = arith.constant dense<0.000000e+00> : vector<8xf32>
    %71 = vector.multi_reduction <add>, %70, %cst_18 [1] : vector<8x256xf32> to vector<8xf32>
    %72 = vector.shape_cast %71 : vector<8xf32> to vector<8x1xf32>
    %cst_19 = arith.constant 2.560000e+02 : f32
    %73 = vector.broadcast %cst_19 : f32 to vector<8x1xf32>
    %74 = arith.divf %72, %73 : vector<8x1xf32>
    %c0_20 = arith.constant 0 : index
    %c0_21 = arith.constant 0 : index
    %75 = vector.load %arg5[%c0_20, %c0_21] : memref<8x2xf32, #tpu.memory_space<vmem>>, vector<8x2xf32>
    %76 = vector.broadcast %74 : vector<8x1xf32> to vector<8x2xf32>
    %77 = arith.mulf %75, %76 : vector<8x2xf32>
    %cst_22 = arith.constant dense<0.000000e+00> : vector<2xf32>
    %78 = vector.multi_reduction <add>, %77, %cst_22 [0] : vector<8x2xf32> to vector<2xf32>
    %79 = vector.shape_cast %78 : vector<2xf32> to vector<1x2xf32>
    %cst_23 = arith.constant 0.000000e+00 : f32
    %80 = vector.broadcast %cst_23 : f32 to vector<1x2xf32>
    %81 = arith.maximumf %79, %80 : vector<1x2xf32>
    %c0_24 = arith.constant 0 : index
    %c0_25 = arith.constant 0 : index
    %82 = vector.load %arg6[%c0_24, %c0_25] : memref<8x2xf32, #tpu.memory_space<vmem>>, vector<8x2xf32>
    %83 = vector.broadcast %81 : vector<1x2xf32> to vector<8x2xf32>
    %84 = arith.mulf %82, %83 : vector<8x2xf32>
    %cst_26 = arith.constant dense<0.000000e+00> : vector<8xf32>
    %85 = vector.multi_reduction <add>, %84, %cst_26 [1] : vector<8x2xf32> to vector<8xf32>
    %86 = vector.shape_cast %85 : vector<8xf32> to vector<8x1xf32>
    %87 = arith.negf %86 : vector<8x1xf32>
    %88 = math.exp %87 : vector<8x1xf32>
    %cst_27 = arith.constant 1.000000e+00 : f32
    %89 = vector.broadcast %cst_27 : f32 to vector<8x1xf32>
    %90 = arith.addf %89, %88 : vector<8x1xf32>
    %91 = arith.divf %89, %90 : vector<8x1xf32>
    %92 = vector.broadcast %91 : vector<8x1xf32> to vector<8x256xf32>
    %93 = arith.mulf %70, %92 : vector<8x256xf32>
    %c0_28 = arith.constant 0 : index
    %c0_29 = arith.constant 0 : index
    %c0_30 = arith.constant 0 : index
    %94 = vector.load %arg7[%c0_28, %c0_29, %c0_30] : memref<1x8x256xf32, #tpu.memory_space<vmem>>, vector<1x8x256xf32>
    %95 = vector.shape_cast %94 : vector<1x8x256xf32> to vector<8x256xf32>
    %96 = vector.shape_cast %93 : vector<8x256xf32> to vector<1x8x256xf32>
    tpu.vector_store %arg7[%c0_28, %c0_29, %c0_30], %96 {strides = array<i32>} : memref<1x8x256xf32, #tpu.memory_space<vmem>>, vector<1x8x256xf32>,
    return
  }
  func.func @transform_0(%arg0: i32) -> (i32, i32, i32) {
    %c0_i32 = arith.constant 0 : i32
    %c0_i32_0 = arith.constant 0 : i32
    %c0_i32_1 = arith.constant 0 : i32
    return %arg0, %c0_i32, %c0_i32_0 : i32, i32, i32
  }
  func.func @transform_1(%arg0: i32) -> (i32, i32, i32) {
    %c0_i32 = arith.constant 0 : i32
    %c0_i32_0 = arith.constant 0 : i32
    %c0_i32_1 = arith.constant 0 : i32
    %c0_i32_2 = arith.constant 0 : i32
    return %c0_i32, %c0_i32_0, %c0_i32_1 : i32, i32, i32
  }
  func.func @transform_2(%arg0: i32) -> (i32, i32) {
    %c0_i32 = arith.constant 0 : i32
    %c0_i32_0 = arith.constant 0 : i32
    %c0_i32_1 = arith.constant 0 : i32
    return %c0_i32, %c0_i32_0 : i32, i32
  }
  func.func @transform_3(%arg0: i32) -> (i32, i32) {
    %c0_i32 = arith.constant 0 : i32
    %c0_i32_0 = arith.constant 0 : i32
    %c0_i32_1 = arith.constant 0 : i32
    return %c0_i32, %c0_i32_0 : i32, i32
  }
  func.func @transform_4(%arg0: i32) -> (i32, i32) {
    %c0_i32 = arith.constant 0 : i32
    %c0_i32_0 = arith.constant 0 : i32
    %c0_i32_1 = arith.constant 0 : i32
    return %c0_i32, %c0_i32_0 : i32, i32
  }
  func.func @transform_5(%arg0: i32) -> (i32, i32) {
    %c0_i32 = arith.constant 0 : i32
    %c0_i32_0 = arith.constant 0 : i32
    %c0_i32_1 = arith.constant 0 : i32
    return %c0_i32, %c0_i32_0 : i32, i32
  }
  func.func @transform_6(%arg0: i32) -> (i32, i32, i32) {
    %c0_i32 = arith.constant 0 : i32
    %c0_i32_0 = arith.constant 0 : i32
    %c0_i32_1 = arith.constant 0 : i32
    return %arg0, %c0_i32, %c0_i32_0 : i32, i32, i32
  }
}

</mosaic_0001>

<llo_original>
// kernel: tpu_custom_call.1
$region0: #{tpu_custom_call.1}
  #allocation0 [shape = 'u32[]', space=smem, size = 0x4, offset = 0x4, fixed_abs, tag = 'smem constant byte address 0x4 - core index']
  #allocation1 [shape = 'u32[144,128]{1,0:T(1,128)}', space=vmem, size = 0x12000, scoped, tag = 'internal scratch']
  %s0 = inlined_call_operand.vmem [shape: f32[2,4,290], index: 0, kind: input, shape index: {}]
  %s1 = inlined_call_operand.vmem [shape: f32[9,8,4], index: 1, kind: input, shape index: {}]
  %s2 = inlined_call_operand.vmem [shape: f32[8,1], index: 2, kind: input, shape index: {}]
  %s3 = inlined_call_operand.vmem [shape: f32[3,256], index: 3, kind: input, shape index: {}]
  %s4 = inlined_call_operand.vmem [shape: f32[8,2], index: 4, kind: input, shape index: {}]
  %s5 = inlined_call_operand.vmem [shape: f32[8,2], index: 5, kind: input, shape index: {}]
  %s6 = inlined_call_operand.hbm [shape: f32[2,8,256], index: 6, kind: output, shape index: {}]
  %s7 = sld [smem:[#allocation0]]
  $region57: #{tpu_custom_call.1} parent=0
    _
  %s9 = ssub.s32 1, %s7
  %s10 = scalar_select 0, %s9, %s7
  $region1: #{tpu_custom_call.1} parent=0
    #allocation2 [shape = 'u8[16384]{0}', space=vmem, size = 0x4000, scoped, tag = 'output window, operand 0']
    #allocation3 [shape = 's32[2]{0}', space=sflag, size = 0x8, scoped, tag = 'scoped memory for tpu_custom_call.1']
    %11 = vsyncpa [#allocation3], 0
    %s12 = scalar_lea.sflag [#allocation3], 1
    %13 = vsyncpa %s12, 0
    loop: start=0, step=1, limit=4
    $region2: #{tpu_custom_call.1} parent=1 // loop_pre_header
      _
    $region3: #{tpu_custom_call.1} parent=1 // loop_header
      %s15 = sphi 0, %s19
      %p16 = scmp.ge.s32.totalorder %s15, 4
      %s25 = sphi 0, %s27
      %s28 = sphi 0, %s25
      %s29 = sphi 0, %s28
      %s45 = sphi 0, %s29
      %s49 = sphi 0, %s49
      %s51 = sphi 0, %s49
      %s52 = sphi 0, %s51
      %s66 = sphi 0, %s52
      %s70 = sphi 0, %s70
      %s72 = sphi 0, %s70
      %s73 = sphi 0, %s72
      %s87 = sphi 0, %s73
      %s91 = sphi 0, %s91
      %s93 = sphi 0, %s91
      %s94 = sphi 0, %s93
      %s108 = sphi 0, %s94
      %s112 = sphi 0, %s112
      %s114 = sphi 0, %s112
      %s115 = sphi 0, %s114
      %s129 = sphi 0, %s115
      %s133 = sphi 0, %s133
      %s135 = sphi 0, %s133
      %s136 = sphi 0, %s135
      %s150 = sphi 0, %s136
      %s156 = sphi 0, %s158
      %s159 = sphi 0, %s156
      %s160 = sphi 0, %s159
      %s176 = sphi 0, %s160
    $region4: #{tpu_custom_call.1} parent=1 // loop_header_branch
      %18 = sbr.rel (%p16) target = $region8
    $region5: #{tpu_custom_call.1} parent=1 // loop_body
      %s20 = ssub.s32 %s15, 1
      %s21 = ssub.s32 %s15, 2
      %s22 = sadd.s32 %s15, 1
      %s23 = ssub.s32 %s15, %s22
      %p24 = scmp.eq.s32.totalorder %s23, 0
      %s26 = sadd.s32 %s25, 1
      %s27 = scalar_select %p24, %s25, %s26
      %p30 = pneg %p24
      %p31 = scmp.eq.s32.totalorder %s15, 1
      %p32 = por %p30, %p31
      %p33 = scmp.ne.s32.totalorder %s25, %s28
      %p34 = scmp.eq.s32.totalorder %s15, 0
      %p35 = por %p33, %p34
      %p36 = scmp.ne.s32.totalorder %s25, %s28
      %p37 = scmp.eq.s32.totalorder %s20, 1
      %p38 = por %p36, %p37
      %p39 = scmp.ne.s32.totalorder %s28, %s29
      %p40 = scmp.eq.s32.totalorder %s20, 0
      %p41 = por %p39, %p40
      %p42 = scmp.ne.s32.totalorder %s28, %s29
      %p43 = scmp.eq.s32.totalorder %s21, 1
      %p44 = por %p42, %p43
      %p46 = scmp.ne.s32.totalorder %s29, %s45
      %p47 = scmp.eq.s32.totalorder %s21, 0
      %p48 = por %p46, %p47
      %s50 = sadd.s32 %s49, 1
      %p53 = scmp.eq.s32.totalorder %s15, 1
      %p54 = scmp.ne.s32.totalorder %s49, %s51
      %p55 = scmp.eq.s32.totalorder %s15, 0
      %p56 = por %p54, %p55
      %p57 = scmp.ne.s32.totalorder %s49, %s51
      %p58 = scmp.eq.s32.totalorder %s20, 1
      %p59 = por %p57, %p58
      %p60 = scmp.ne.s32.totalorder %s51, %s52
      %p61 = scmp.eq.s32.totalorder %s20, 0
      %p62 = por %p60, %p61
      %p63 = scmp.ne.s32.totalorder %s51, %s52
      %p64 = scmp.eq.s32.totalorder %s21, 1
      %p65 = por %p63, %p64
      %p67 = scmp.ne.s32.totalorder %s52, %s66
      %p68 = scmp.eq.s32.totalorder %s21, 0
      %p69 = por %p67, %p68
      %s71 = sadd.s32 %s70, 1
      %p74 = scmp.eq.s32.totalorder %s15, 1
      %p75 = scmp.ne.s32.totalorder %s70, %s72
      %p76 = scmp.eq.s32.totalorder %s15, 0
      %p77 = por %p75, %p76
      %p78 = scmp.ne.s32.totalorder %s70, %s72
      %p79 = scmp.eq.s32.totalorder %s20, 1
      %p80 = por %p78, %p79
      %p81 = scmp.ne.s32.totalorder %s72, %s73
      %p82 = scmp.eq.s32.totalorder %s20, 0
      %p83 = por %p81, %p82
      %p84 = scmp.ne.s32.totalorder %s72, %s73
      %p85 = scmp.eq.s32.totalorder %s21, 1
      %p86 = por %p84, %p85
      %p88 = scmp.ne.s32.totalorder %s73, %s87
      %p89 = scmp.eq.s32.totalorder %s21, 0
      %p90 = por %p88, %p89
      %s92 = sadd.s32 %s91, 1
      %p95 = scmp.eq.s32.totalorder %s15, 1
      %p96 = scmp.ne.s32.totalorder %s91, %s93
      %p97 = scmp.eq.s32.totalorder %s15, 0
      %p98 = por %p96, %p97
      %p99 = scmp.ne.s32.totalorder %s91, %s93
      %p100 = scmp.eq.s32.totalorder %s20, 1
      %p101 = por %p99, %p100
      %p102 = scmp.ne.s32.totalorder %s93, %s94
      %p103 = scmp.eq.s32.totalorder %s20, 0
      %p104 = por %p102, %p103
      %p105 = scmp.ne.s32.totalorder %s93, %s94
      %p106 = scmp.eq.s32.totalorder %s21, 1
      %p107 = por %p105, %p106
      %p109 = scmp.ne.s32.totalorder %s94, %s108
      %p110 = scmp.eq.s32.totalorder %s21, 0
      %p111 = por %p109, %p110
      %s113 = sadd.s32 %s112, 1
      %p116 = scmp.eq.s32.totalorder %s15, 1
      %p117 = scmp.ne.s32.totalorder %s112, %s114
      %p118 = scmp.eq.s32.totalorder %s15, 0
      %p119 = por %p117, %p118
      %p120 = scmp.ne.s32.totalorder %s112, %s114
      %p121 = scmp.eq.s32.totalorder %s20, 1
      %p122 = por %p120, %p121
      %p123 = scmp.ne.s32.totalorder %s114, %s115
      %p124 = scmp.eq.s32.totalorder %s20, 0
      %p125 = por %p123, %p124
      %p126 = scmp.ne.s32.totalorder %s114, %s115
      %p127 = scmp.eq.s32.totalorder %s21, 1
      %p128 = por %p126, %p127
      %p130 = scmp.ne.s32.totalorder %s115, %s129
      %p131 = scmp.eq.s32.totalorder %s21, 0
      %p132 = por %p130, %p131
      %s134 = sadd.s32 %s133, 1
      %p137 = scmp.eq.s32.totalorder %s15, 1
      %p138 = scmp.ne.s32.totalorder %s133, %s135
      %p139 = scmp.eq.s32.totalorder %s15, 0
      %p140 = por %p138, %p139
      %p141 = scmp.ne.s32.totalorder %s133, %s135
      %p142 = scmp.eq.s32.totalorder %s20, 1
      %p143 = por %p141, %p142
      %p144 = scmp.ne.s32.totalorder %s135, %s136
      %p145 = scmp.eq.s32.totalorder %s20, 0
      %p146 = por %p144, %p145
      %p147 = scmp.ne.s32.totalorder %s135, %s136
      %p148 = scmp.eq.s32.totalorder %s21, 1
      %p149 = por %p147, %p148
      %p151 = scmp.ne.s32.totalorder %s136, %s150
      %p152 = scmp.eq.s32.totalorder %s21, 0
      %p153 = por %p151, %p152
      %s154 = ssub.s32 %s15, %s22
      %p155 = scmp.eq.s32.totalorder %s154, 0
      %s157 = sadd.s32 %s156, 1
      %s158 = scalar_select %p155, %s156, %s157
      %p161 = pneg %p155
      %p162 = scmp.eq.s32.totalorder %s15, 1
      %p163 = por %p161, %p162
      %p164 = scmp.ne.s32.totalorder %s156, %s159
      %p165 = scmp.eq.s32.totalorder %s15, 0
      %p166 = por %p164, %p165
      %p167 = scmp.ne.s32.totalorder %s156, %s159
      %p168 = scmp.eq.s32.totalorder %s20, 1
      %p169 = por %p167, %p168
      %p170 = scmp.ne.s32.totalorder %s159, %s160
      %p171 = scmp.eq.s32.totalorder %s20, 0
      %p172 = por %p170, %p171
      %p173 = scmp.ne.s32.totalorder %s159, %s160
      %p174 = scmp.eq.s32.totalorder %s21, 1
      %p175 = por %p173, %p174
      %p177 = scmp.ne.s32.totalorder %s160, %s176
      %p178 = scmp.eq.s32.totalorder %s21, 0
      %p179 = por %p177, %p178
      %p180 = scmp.le.s32.totalorder 1, %s15
      %p181 = scmp.lt.s32.totalorder %s15, 3
      %p182 = pnand %p180, %p181
      %p183 = pneg %p182
      // Predicated region
      $region9: #{tpu_custom_call.1} parent=5 // pred_check
        _
      $region10: #{tpu_custom_call.1} parent=5 // pred_check_branch
        %185 = sbr.rel (%p182) target = $region12
      $region11: #{tpu_custom_call.1} parent=5 // pred_region
        %s186 = ssub.s32 %s15, 1
        // Predicated region
        $region13: #{tpu_custom_call.1} parent=11 // pred_check
          %p187 = pneg %p62
        $region14: #{tpu_custom_call.1} parent=11 // pred_check_branch
          %189 = sbr.rel (%p187) target = $region16
        $region15: #{tpu_custom_call.1} parent=11 // pred_region
          _
        $region16: #{tpu_custom_call.1} parent=11 // pred_fallthru
          _
        // Predicated region
        $region17: #{tpu_custom_call.1} parent=11 // pred_check
          %p190 = pneg %p83
        $region18: #{tpu_custom_call.1} parent=11 // pred_check_branch
          %192 = sbr.rel (%p190) target = $region20
        $region19: #{tpu_custom_call.1} parent=11 // pred_region
          _
        $region20: #{tpu_custom_call.1} parent=11 // pred_fallthru
          _
        // Predicated region
        $region21: #{tpu_custom_call.1} parent=11 // pred_check
          %p193 = pneg %p104
        $region22: #{tpu_custom_call.1} parent=11 // pred_check_branch
          %195 = sbr.rel (%p193) target = $region24
        $region23: #{tpu_custom_call.1} parent=11 // pred_region
          _
        $region24: #{tpu_custom_call.1} parent=11 // pred_fallthru
          _
        // Predicated region
        $region25: #{tpu_custom_call.1} parent=11 // pred_check
          %p196 = pneg %p125
        $region26: #{tpu_custom_call.1} parent=11 // pred_check_branch
          %198 = sbr.rel (%p196) target = $region28
        $region27: #{tpu_custom_call.1} parent=11 // pred_region
          _
        $region28: #{tpu_custom_call.1} parent=11 // pred_fallthru
          _
        // Predicated region
        $region29: #{tpu_custom_call.1} parent=11 // pred_check
          %p199 = pneg %p146
        $region30: #{tpu_custom_call.1} parent=11 // pred_check_branch
          %201 = sbr.rel (%p199) target = $region32
        $region31: #{tpu_custom_call.1} parent=11 // pred_region
          _
        $region32: #{tpu_custom_call.1} parent=11 // pred_fallthru
          _
      $region12: #{tpu_custom_call.1} parent=5 // pred_fallthru
        _
      %p202 = scmp.lt.s32.totalorder %s15, 2
      // Predicated region
      $region33: #{tpu_custom_call.1} parent=5 // pred_check
        %p203 = pneg %p202
      $region34: #{tpu_custom_call.1} parent=5 // pred_check_branch
        %205 = sbr.rel (%p203) target = $region36
      $region35: #{tpu_custom_call.1} parent=5 // pred_region
        // Predicated region
        $region37: #{tpu_custom_call.1} parent=35 // pred_check
          %p206 = pneg %p35
        $region38: #{tpu_custom_call.1} parent=35 // pred_check_branch
          %208 = sbr.rel (%p206) target = $region40
        $region39: #{tpu_custom_call.1} parent=35 // pred_region
          %p209 = scmp.lt.s32.totalorder %s15, 1
          %s210 = scalar_select %p209, %s15, 1
          %s211 = smul.addr %s210, 3
          %s212 = smul.addr %s211, 4
          %s213 = scalar_lea.vmem %s0, %s212
        $region40: #{tpu_custom_call.1} parent=35 // pred_fallthru
          _
      $region36: #{tpu_custom_call.1} parent=5 // pred_fallthru
        _
      %p214 = scmp.le.s32.totalorder 1, %s15
      %p215 = scmp.lt.s32.totalorder %s15, 3
      %p216 = pnand %p214, %p215
      %p217 = pneg %p216
      // Predicated region
      $region41: #{tpu_custom_call.1} parent=5 // pred_check
        _
      $region42: #{tpu_custom_call.1} parent=5 // pred_check_branch
        %219 = sbr.rel (%p216) target = $region44
      $region43: #{tpu_custom_call.1} parent=5 // pred_region
        %s220 = ssub.s32 %s15, 1
        %p221 = scmp.lt.s32.totalorder %s20, 1
        %s222 = scalar_select %p221, %s20, 1
        %s223 = smul.addr %s222, 3
        %s224 = smul.addr %s223, 4
        %s225 = scalar_lea.vmem %s0, %s224
        %p226 = pneg %p41
        %p227 = pneg %p38
        %p228 = pneg %p62
        %p229 = pneg %p59
        %p230 = pneg %p83
        %p231 = pneg %p80
        %p232 = pneg %p104
        %p233 = pneg %p101
        %p234 = pneg %p125
        %p235 = pneg %p122
        %p236 = pneg %p146
        %p237 = pneg %p143
        %p238 = pneg %p172
        %p239 = pneg %p169
        %s240 = sand.u32 %s159, 1
        %s241 = scalar_lea.sflag [#allocation3], %s240
        %s242 = sand.u32 %s159, 1
        %s243 = smul.addr %s242, 16
        %s244 = scalar_lea.vmem [#allocation2], %s243
        %p245 = scmp.lt.s32.totalorder %s20, 1
        %s246 = scalar_select %p245, %s20, 1
        %s247 = smul.addr %s246, 3
        %s248 = smul.addr %s247, 4
        %s249 = scalar_lea.vmem %s0, %s248
        %v250 = vld [vmem:[%s249] sm:$0xff]
        %v251 = vld [vmem:[%s249 + $0x8] sm:$0xf]
        %v252 = vld [vmem:[%s1] sm:$0xff]
        %v253 = vld [vmem:[%s1 + $0x8] sm:$0xff]
        %v254 = vld [vmem:[%s1 + $0x10] sm:$0xff]
        %v255 = vld [vmem:[%s1 + $0x18] sm:$0xff]
        %v256 = vld [vmem:[%s1 + $0x20] sm:$0xff]
        %v257 = vld [vmem:[%s1 + $0x28] sm:$0xff]
        %v258 = vld [vmem:[%s1 + $0x30] sm:$0xff]
        %v259 = vld [vmem:[%s1 + $0x38] sm:$0xff]
        %v260 = vld [vmem:[%s1 + $0x40] sm:$0xff]
        %v261 = vld [vmem:[%s3] sm:$0x77]
        %v263 = vlaneseq
        %v264 = vshrl.u32 %v263, 7
        %v265 = vsub.s32 0, %v264
        %v266 = vrot.slane %v261, %v265
        %v267 = vlaneseq
        %v268 = vshrl.u32 %v267, 7
        %v269 = vsub.s32 4, %v268
        %v270 = vrot.slane %v261, %v269
        %v273 = vlaneseq
        %v274 = vshrl.u32 %v273, 7
        %v275 = vsub.s32 0, %v274
        %v276 = vrot.slane %v266, %v275
        %v277 = vlaneseq
        %v278 = vshrl.u32 %v277, 7
        %v279 = vsub.s32 0, %v278
        %v280 = vrot.slane %v270, %v279
        %v283 = vcombine.low %v276, %v280
        %v285 = vmul.f32 %v250, %v283
        %v288 = vcombine.high %v250, %v250
        %289 = vrot.lane.b32.xlu0 %v250, 127
        %v290 = vpop.permute.xlu0 %289
        %291 = vrot.lane.b32.xlu0 %v288, 127
        %v292 = vpop.permute.xlu0 %291
        %293 = vrot.lane.b32.xlu0 %v251, 127
        %v294 = vpop.permute.xlu0 %293
        %vm295 = vcmask 1039360
        %v296 = vsel %vm295, %v290, %v292
        %v297 = vsel %vm295, %v292, %v294
        %vm298 = vcmask 31744
        %v300 = vsel %vm298, %v253, 0
        %vm302 = vcmask 1043456
        %v303 = vsel %vm302, %v296, 0
        %v305 = vsel %vm302, %v297, 0
        %307 = vmatprep.subr.mxu0 %v305
        %308 = vmatpush1.msra.mxu0 %v303
        %309 = vmatprep.subr.mxu0 0.0
        %310 = vmatpush1.msra.mxu0 0.0
        %311 = vmatprep.subr.mxu0 0.0
        %312 = vmatpush1.msra.mxu0 0.0
        %313 = vmatprep.subr.mxu0 0.0
        %314 = vmatpush1.msra.mxu0 0.0
        %315 = vmatprep.subr.mxu0 0.0
        %316 = vmatpush1.msra.mxu0 0.0
        %317 = vmatprep.subr.mxu0 0.0
        %318 = vmatpush1.msra.mxu0 0.0
        %319 = vmatprep.subr.mxu0 0.0
        %320 = vmatpush1.msra.mxu0 0.0
        %321 = vmatprep.subr.mxu0 0.0
        %322 = vmatpush1.msra.mxu0 0.0
        %323 = vmatprep.subr.mxu0 0.0
        %324 = vmatpush1.msra.mxu0 0.0
        %325 = vmatprep.subr.mxu0 0.0
        %326 = vmatpush1.msra.mxu0 0.0
        %327 = vmatprep.subr.mxu0 0.0
        %328 = vmatpush1.msra.mxu0 0.0
        %329 = vmatprep.subr.mxu0 0.0
        %330 = vmatpush1.msra.mxu0 0.0
        %331 = vmatprep.subr.mxu0 0.0
        %332 = vmatpush1.msra.mxu0 0.0
        %333 = vmatprep.subr.mxu0 0.0
        %334 = vmatpush1.msra.mxu0 0.0
        %335 = vmatprep.subr.mxu0 0.0
        %336 = vmatpush1.msra.mxu0 0.0
        %337 = vmatprep.subr.mxu0 0.0
        %338 = vmatpush1.msra.mxu0 0.0
        %339 = vmatprep.subr.mxu0 0.0
        %340 = vmatpush1.msra.mxu0 0.0
        %341 = vmatprep.subr.mxu0 0.0
        %342 = vmatpush1.msra.mxu0 0.0
        %343 = vmatprep.subr.mxu0 0.0
        %344 = vmatpush1.msra.mxu0 0.0
        %345 = vmatprep.subr.mxu0 0.0
        %346 = vmatpush1.msra.mxu0 0.0
        %347 = vmatprep.subr.mxu0 0.0
        %348 = vmatpush1.msra.mxu0 0.0
        %349 = vmatprep.subr.mxu0 0.0
        %350 = vmatpush1.msra.mxu0 0.0
        %351 = vmatprep.subr.mxu0 0.0
        %352 = vmatpush1.msra.mxu0 0.0
        %353 = vmatprep.subr.mxu0 0.0
        %354 = vmatpush1.msra.mxu0 0.0
        %355 = vmatprep.subr.mxu0 0.0
        %356 = vmatpush1.msra.mxu0 0.0
        %357 = vmatprep.subr.mxu0 0.0
        %358 = vmatpush1.msra.mxu0 0.0
        %359 = vmatprep.subr.mxu0 0.0
        %360 = vmatpush1.msra.mxu0 0.0
        %361 = vmatprep.subr.mxu0 0.0
        %362 = vmatpush1.msra.mxu0 0.0
        %363 = vmatprep.subr.mxu0 0.0
        %364 = vmatpush1.msra.mxu0 0.0
        %365 = vmatprep.subr.mxu0 0.0
        %366 = vmatpush1.msra.mxu0 0.0
        %367 = vmatprep.subr.mxu0 0.0
        %368 = vmatpush1.msra.mxu0 0.0
        %369 = vmatprep.subr.mxu0 0.0
        %370 = vmatpush1.msra.mxu0 0.0
        %371 = vmatprep.mubr.f32.mxu0 0.0
        %372 = vmatmul.mubr.f32.gmra.mrb[0].mxu0 %v300
        %v373 = vpop.f32.mrb[0].mxu0
        %v374 = vadd.f32 0.0, %v373
        %v375 = vpop.f32.mrb[0].mxu0
        %v376 = vadd.f32 0.0, %v375
        %377 = vdwg.mxu0
        %v379 = vcombine.high %v285, %v285
        %v381 = vsel %vm298, %v252, 0
        %v383 = vsel %vm302, %v285, 0
        %v385 = vsel %vm302, %v379, 0
        %387 = vmatprep.subr.mxu0 %v385
        %388 = vmatpush1.msra.mxu0 %v383
        %389 = vmatprep.subr.mxu0 0.0
        %390 = vmatpush1.msra.mxu0 0.0
        %391 = vmatprep.subr.mxu0 0.0
        %392 = vmatpush1.msra.mxu0 0.0
        %393 = vmatprep.subr.mxu0 0.0
        %394 = vmatpush1.msra.mxu0 0.0
        %395 = vmatprep.subr.mxu0 0.0
        %396 = vmatpush1.msra.mxu0 0.0
        %397 = vmatprep.subr.mxu0 0.0
        %398 = vmatpush1.msra.mxu0 0.0
        %399 = vmatprep.subr.mxu0 0.0
        %400 = vmatpush1.msra.mxu0 0.0
        %401 = vmatprep.subr.mxu0 0.0
        %402 = vmatpush1.msra.mxu0 0.0
        %403 = vmatprep.subr.mxu0 0.0
        %404 = vmatpush1.msra.mxu0 0.0
        %405 = vmatprep.subr.mxu0 0.0
        %406 = vmatpush1.msra.mxu0 0.0
        %407 = vmatprep.subr.mxu0 0.0
        %408 = vmatpush1.msra.mxu0 0.0
        %409 = vmatprep.subr.mxu0 0.0
        %410 = vmatpush1.msra.mxu0 0.0
        %411 = vmatprep.subr.mxu0 0.0
        %412 = vmatpush1.msra.mxu0 0.0
        %413 = vmatprep.subr.mxu0 0.0
        %414 = vmatpush1.msra.mxu0 0.0
        %415 = vmatprep.subr.mxu0 0.0
        %416 = vmatpush1.msra.mxu0 0.0
        %417 = vmatprep.subr.mxu0 0.0
        %418 = vmatpush1.msra.mxu0 0.0
        %419 = vmatprep.subr.mxu0 0.0
        %420 = vmatpush1.msra.mxu0 0.0
        %421 = vmatprep.subr.mxu0 0.0
        %422 = vmatpush1.msra.mxu0 0.0
        %423 = vmatprep.subr.mxu0 0.0
        %424 = vmatpush1.msra.mxu0 0.0
        %425 = vmatprep.subr.mxu0 0.0
        %426 = vmatpush1.msra.mxu0 0.0
        %427 = vmatprep.subr.mxu0 0.0
        %428 = vmatpush1.msra.mxu0 0.0
        %429 = vmatprep.subr.mxu0 0.0
        %430 = vmatpush1.msra.mxu0 0.0
        %431 = vmatprep.subr.mxu0 0.0
        %432 = vmatpush1.msra.mxu0 0.0
        %433 = vmatprep.subr.mxu0 0.0
        %434 = vmatpush1.msra.mxu0 0.0
        %435 = vmatprep.subr.mxu0 0.0
        %436 = vmatpush1.msra.mxu0 0.0
        %437 = vmatprep.subr.mxu0 0.0
        %438 = vmatpush1.msra.mxu0 0.0
        %439 = vmatprep.subr.mxu0 0.0
        %440 = vmatpush1.msra.mxu0 0.0
        %441 = vmatprep.subr.mxu0 0.0
        %442 = vmatpush1.msra.mxu0 0.0
        %443 = vmatprep.subr.mxu0 0.0
        %444 = vmatpush1.msra.mxu0 0.0
        %445 = vmatprep.subr.mxu0 0.0
        %446 = vmatpush1.msra.mxu0 0.0
        %447 = vmatprep.subr.mxu0 0.0
        %448 = vmatpush1.msra.mxu0 0.0
        %449 = vmatprep.subr.mxu0 0.0
        %450 = vmatpush1.msra.mxu0 0.0
        %451 = vmatprep.mubr.f32.mxu0 0.0
        %452 = vmatmul.mubr.f32.gmra.mrb[0].mxu0 %v381
        %v453 = vpop.f32.mrb[0].mxu0
        %v454 = vadd.f32 %v374, %v453
        %v455 = vpop.f32.mrb[0].mxu0
        %v456 = vadd.f32 %v376, %v455
        %457 = vdwg.mxu0
        %v458 = vlaneseq
        %v459 = vshrl.u32 %v458, 7
        %v460 = vsub.s32 2, %v459
        %v461 = vrot.slane %v261, %v460
        %v462 = vlaneseq
        %v463 = vshrl.u32 %v462, 7
        %v464 = vsub.s32 6, %v463
        %v465 = vrot.slane %v261, %v464
        %v468 = vlaneseq
        %v469 = vshrl.u32 %v468, 7
        %v470 = vsub.s32 2, %v469
        %v471 = vrot.slane %v461, %v470
        %v472 = vlaneseq
        %v473 = vshrl.u32 %v472, 7
        %v474 = vsub.s32 2, %v473
        %v475 = vrot.slane %v465, %v474
        %v478 = vcombine.low %v471, %v475
        %479 = vrot.lane.b32.xlu0 %v478, 2
        %v480 = vpop.permute.xlu0 %479
        %v481 = vrot.slane %v480, 4
        %vm482 = vcmask 15360
        %v483 = vsel %vm482, %v481, %v480
        %v486 = vmul.f32 %v250, %v483
        %v487 = vmul.f32 %v251, %v481
        %v490 = vcombine.high %v486, %v486
        %491 = vrot.lane.b32.xlu0 %v486, 126
        %v492 = vpop.permute.xlu0 %491
        %493 = vrot.lane.b32.xlu0 %v490, 126
        %v494 = vpop.permute.xlu0 %493
        %495 = vrot.lane.b32.xlu0 %v487, 126
        %v496 = vpop.permute.xlu0 %495
        %vm497 = vcmask 1031168
        %v498 = vsel %vm497, %v492, %v494
        %v499 = vsel %vm497, %v494, %v496
        %v501 = vsel %vm298, %v254, 0
        %v503 = vsel %vm302, %v498, 0
        %v505 = vsel %vm302, %v499, 0
        %507 = vmatprep.subr.mxu0 %v505
        %508 = vmatpush1.msra.mxu0 %v503
        %509 = vmatprep.subr.mxu0 0.0
        %510 = vmatpush1.msra.mxu0 0.0
        %511 = vmatprep.subr.mxu0 0.0
        %512 = vmatpush1.msra.mxu0 0.0
        %513 = vmatprep.subr.mxu0 0.0
        %514 = vmatpush1.msra.mxu0 0.0
        %515 = vmatprep.subr.mxu0 0.0
        %516 = vmatpush1.msra.mxu0 0.0
        %517 = vmatprep.subr.mxu0 0.0
        %518 = vmatpush1.msra.mxu0 0.0
        %519 = vmatprep.subr.mxu0 0.0
        %520 = vmatpush1.msra.mxu0 0.0
        %521 = vmatprep.subr.mxu0 0.0
        %522 = vmatpush1.msra.mxu0 0.0
        %523 = vmatprep.subr.mxu0 0.0
        %524 = vmatpush1.msra.mxu0 0.0
        %525 = vmatprep.subr.mxu0 0.0
        %526 = vmatpush1.msra.mxu0 0.0
        %527 = vmatprep.subr.mxu0 0.0
        %528 = vmatpush1.msra.mxu0 0.0
        %529 = vmatprep.subr.mxu0 0.0
        %530 = vmatpush1.msra.mxu0 0.0
        %531 = vmatprep.subr.mxu0 0.0
        %532 = vmatpush1.msra.mxu0 0.0
        %533 = vmatprep.subr.mxu0 0.0
        %534 = vmatpush1.msra.mxu0 0.0
        %535 = vmatprep.subr.mxu0 0.0
        %536 = vmatpush1.msra.mxu0 0.0
        %537 = vmatprep.subr.mxu0 0.0
        %538 = vmatpush1.msra.mxu0 0.0
        %539 = vmatprep.subr.mxu0 0.0
        %540 = vmatpush1.msra.mxu0 0.0
        %541 = vmatprep.subr.mxu0 0.0
        %542 = vmatpush1.msra.mxu0 0.0
        %543 = vmatprep.subr.mxu0 0.0
        %544 = vmatpush1.msra.mxu0 0.0
        %545 = vmatprep.subr.mxu0 0.0
        %546 = vmatpush1.msra.mxu0 0.0
        %547 = vmatprep.subr.mxu0 0.0
        %548 = vmatpush1.msra.mxu0 0.0
        %549 = vmatprep.subr.mxu0 0.0
        %550 = vmatpush1.msra.mxu0 0.0
        %551 = vmatprep.subr.mxu0 0.0
        %552 = vmatpush1.msra.mxu0 0.0
        %553 = vmatprep.subr.mxu0 0.0
        %554 = vmatpush1.msra.mxu0 0.0
        %555 = vmatprep.subr.mxu0 0.0
        %556 = vmatpush1.msra.mxu0 0.0
        %557 = vmatprep.subr.mxu0 0.0
        %558 = vmatpush1.msra.mxu0 0.0
        %559 = vmatprep.subr.mxu0 0.0
        %560 = vmatpush1.msra.mxu0 0.0
        %561 = vmatprep.subr.mxu0 0.0
        %562 = vmatpush1.msra.mxu0 0.0
        %563 = vmatprep.subr.mxu0 0.0
        %564 = vmatpush1.msra.mxu0 0.0
        %565 = vmatprep.subr.mxu0 0.0
        %566 = vmatpush1.msra.mxu0 0.0
        %567 = vmatprep.subr.mxu0 0.0
        %568 = vmatpush1.msra.mxu0 0.0
        %569 = vmatprep.subr.mxu0 0.0
        %570 = vmatpush1.msra.mxu0 0.0
        %571 = vmatprep.mubr.f32.mxu0 0.0
        %572 = vmatmul.mubr.f32.gmra.mrb[0].mxu0 %v501
        %v573 = vpop.f32.mrb[0].mxu0
        %v574 = vadd.f32 0.0, %v573
        %v575 = vpop.f32.mrb[0].mxu0
        %v576 = vadd.f32 0.0, %v575
        %577 = vdwg.mxu0
        %v578 = vadd.f32 %v454, %v574
        %v579 = vadd.f32 %v456, %v576
        %580 = vrot.lane.b32.xlu0 %v283, 16
        %v581 = vpop.permute.xlu0 %580
        %v582 = vrot.slane %v581, 4
        %vm583 = vcmask 130048
        %v584 = vsel %vm583, %v582, %v581
        %v587 = vmul.f32 %v250, %v584
        %v588 = vmul.f32 %v251, %v582
        %v591 = vcombine.high %v587, %v587
        %592 = vrot.lane.b32.xlu0 %v587, 112
        %v593 = vpop.permute.xlu0 %592
        %594 = vrot.lane.b32.xlu0 %v591, 112
        %v595 = vpop.permute.xlu0 %594
        %596 = vrot.lane.b32.xlu0 %v588, 112
        %v597 = vpop.permute.xlu0 %596
        %vm598 = vcmask 916480
        %v599 = vsel %vm598, %v593, %v595
        %v600 = vsel %vm598, %v595, %v597
        %v602 = vsel %vm298, %v255, 0
        %v604 = vsel %vm302, %v599, 0
        %v606 = vsel %vm302, %v600, 0
        %608 = vmatprep.subr.mxu0 %v606
        %609 = vmatpush1.msra.mxu0 %v604
        %610 = vmatprep.subr.mxu0 0.0
        %611 = vmatpush1.msra.mxu0 0.0
        %612 = vmatprep.subr.mxu0 0.0
        %613 = vmatpush1.msra.mxu0 0.0
        %614 = vmatprep.subr.mxu0 0.0
        %615 = vmatpush1.msra.mxu0 0.0
        %616 = vmatprep.subr.mxu0 0.0
        %617 = vmatpush1.msra.mxu0 0.0
        %618 = vmatprep.subr.mxu0 0.0
        %619 = vmatpush1.msra.mxu0 0.0
        %620 = vmatprep.subr.mxu0 0.0
        %621 = vmatpush1.msra.mxu0 0.0
        %622 = vmatprep.subr.mxu0 0.0
        %623 = vmatpush1.msra.mxu0 0.0
        %624 = vmatprep.subr.mxu0 0.0
        %625 = vmatpush1.msra.mxu0 0.0
        %626 = vmatprep.subr.mxu0 0.0
        %627 = vmatpush1.msra.mxu0 0.0
        %628 = vmatprep.subr.mxu0 0.0
        %629 = vmatpush1.msra.mxu0 0.0
        %630 = vmatprep.subr.mxu0 0.0
        %631 = vmatpush1.msra.mxu0 0.0
        %632 = vmatprep.subr.mxu0 0.0
        %633 = vmatpush1.msra.mxu0 0.0
        %634 = vmatprep.subr.mxu0 0.0
        %635 = vmatpush1.msra.mxu0 0.0
        %636 = vmatprep.subr.mxu0 0.0
        %637 = vmatpush1.msra.mxu0 0.0
        %638 = vmatprep.subr.mxu0 0.0
        %639 = vmatpush1.msra.mxu0 0.0
        %640 = vmatprep.subr.mxu0 0.0
        %641 = vmatpush1.msra.mxu0 0.0
        %642 = vmatprep.subr.mxu0 0.0
        %643 = vmatpush1.msra.mxu0 0.0
        %644 = vmatprep.subr.mxu0 0.0
        %645 = vmatpush1.msra.mxu0 0.0
        %646 = vmatprep.subr.mxu0 0.0
        %647 = vmatpush1.msra.mxu0 0.0
        %648 = vmatprep.subr.mxu0 0.0
        %649 = vmatpush1.msra.mxu0 0.0
        %650 = vmatprep.subr.mxu0 0.0
        %651 = vmatpush1.msra.mxu0 0.0
        %652 = vmatprep.subr.mxu0 0.0
        %653 = vmatpush1.msra.mxu0 0.0
        %654 = vmatprep.subr.mxu0 0.0
        %655 = vmatpush1.msra.mxu0 0.0
        %656 = vmatprep.subr.mxu0 0.0
        %657 = vmatpush1.msra.mxu0 0.0
        %658 = vmatprep.subr.mxu0 0.0
        %659 = vmatpush1.msra.mxu0 0.0
        %660 = vmatprep.subr.mxu0 0.0
        %661 = vmatpush1.msra.mxu0 0.0
        %662 = vmatprep.subr.mxu0 0.0
        %663 = vmatpush1.msra.mxu0 0.0
        %664 = vmatprep.subr.mxu0 0.0
        %665 = vmatpush1.msra.mxu0 0.0
        %666 = vmatprep.subr.mxu0 0.0
        %667 = vmatpush1.msra.mxu0 0.0
        %668 = vmatprep.subr.mxu0 0.0
        %669 = vmatpush1.msra.mxu0 0.0
        %670 = vmatprep.subr.mxu0 0.0
        %671 = vmatpush1.msra.mxu0 0.0
        %672 = vmatprep.mubr.f32.mxu0 0.0
        %673 = vmatmul.mubr.f32.gmra.mrb[0].mxu0 %v602
        %v674 = vpop.f32.mrb[0].mxu0
        %v675 = vadd.f32 0.0, %v674
        %v676 = vpop.f32.mrb[0].mxu0
        %v677 = vadd.f32 0.0, %v676
        %678 = vdwg.mxu0
        %v679 = vadd.f32 %v578, %v675
        %v680 = vadd.f32 %v579, %v677
        %681 = vrot.lane.b32.xlu0 %v250, 111
        %v682 = vpop.permute.xlu0 %681
        %683 = vrot.lane.b32.xlu0 %v288, 111
        %v684 = vpop.permute.xlu0 %683
        %685 = vrot.lane.b32.xlu0 %v251, 111
        %v686 = vpop.permute.xlu0 %685
        %vm687 = vcmask 908288
        %v688 = vsel %vm687, %v682, %v684
        %v689 = vsel %vm687, %v684, %v686
        %v691 = vsel %vm298, %v256, 0
        %v693 = vsel %vm302, %v688, 0
        %v695 = vsel %vm302, %v689, 0
        %697 = vmatprep.subr.mxu0 %v695
        %698 = vmatpush1.msra.mxu0 %v693
        %699 = vmatprep.subr.mxu0 0.0
        %700 = vmatpush1.msra.mxu0 0.0
        %701 = vmatprep.subr.mxu0 0.0
        %702 = vmatpush1.msra.mxu0 0.0
        %703 = vmatprep.subr.mxu0 0.0
        %704 = vmatpush1.msra.mxu0 0.0
        %705 = vmatprep.subr.mxu0 0.0
        %706 = vmatpush1.msra.mxu0 0.0
        %707 = vmatprep.subr.mxu0 0.0
        %708 = vmatpush1.msra.mxu0 0.0
        %709 = vmatprep.subr.mxu0 0.0
        %710 = vmatpush1.msra.mxu0 0.0
        %711 = vmatprep.subr.mxu0 0.0
        %712 = vmatpush1.msra.mxu0 0.0
        %713 = vmatprep.subr.mxu0 0.0
        %714 = vmatpush1.msra.mxu0 0.0
        %715 = vmatprep.subr.mxu0 0.0
        %716 = vmatpush1.msra.mxu0 0.0
        %717 = vmatprep.subr.mxu0 0.0
        %718 = vmatpush1.msra.mxu0 0.0
        %719 = vmatprep.subr.mxu0 0.0
        %720 = vmatpush1.msra.mxu0 0.0
        %721 = vmatprep.subr.mxu0 0.0
        %722 = vmatpush1.msra.mxu0 0.0
        %723 = vmatprep.subr.mxu0 0.0
        %724 = vmatpush1.msra.mxu0 0.0
        %725 = vmatprep.subr.mxu0 0.0
        %726 = vmatpush1.msra.mxu0 0.0
        %727 = vmatprep.subr.mxu0 0.0
        %728 = vmatpush1.msra.mxu0 0.0
        %729 = vmatprep.subr.mxu0 0.0
        %730 = vmatpush1.msra.mxu0 0.0
        %731 = vmatprep.subr.mxu0 0.0
        %732 = vmatpush1.msra.mxu0 0.0
        %733 = vmatprep.subr.mxu0 0.0
        %734 = vmatpush1.msra.mxu0 0.0
        %735 = vmatprep.subr.mxu0 0.0
        %736 = vmatpush1.msra.mxu0 0.0
        %737 = vmatprep.subr.mxu0 0.0
        %738 = vmatpush1.msra.mxu0 0.0
        %739 = vmatprep.subr.mxu0 0.0
        %740 = vmatpush1.msra.mxu0 0.0
        %741 = vmatprep.subr.mxu0 0.0
        %742 = vmatpush1.msra.mxu0 0.0
        %743 = vmatprep.subr.mxu0 0.0
        %744 = vmatpush1.msra.mxu0 0.0
        %745 = vmatprep.subr.mxu0 0.0
        %746 = vmatpush1.msra.mxu0 0.0
        %747 = vmatprep.subr.mxu0 0.0
        %748 = vmatpush1.msra.mxu0 0.0
        %749 = vmatprep.subr.mxu0 0.0
        %750 = vmatpush1.msra.mxu0 0.0
        %751 = vmatprep.subr.mxu0 0.0
        %752 = vmatpush1.msra.mxu0 0.0
        %753 = vmatprep.subr.mxu0 0.0
        %754 = vmatpush1.msra.mxu0 0.0
        %755 = vmatprep.subr.mxu0 0.0
        %756 = vmatpush1.msra.mxu0 0.0
        %757 = vmatprep.subr.mxu0 0.0
        %758 = vmatpush1.msra.mxu0 0.0
        %759 = vmatprep.subr.mxu0 0.0
        %760 = vmatpush1.msra.mxu0 0.0
        %761 = vmatprep.mubr.f32.mxu0 0.0
        %762 = vmatmul.mubr.f32.gmra.mrb[0].mxu0 %v691
        %v763 = vpop.f32.mrb[0].mxu0
        %v764 = vadd.f32 0.0, %v763
        %v765 = vpop.f32.mrb[0].mxu0
        %v766 = vadd.f32 0.0, %v765
        %767 = vdwg.mxu0
        %v768 = vadd.f32 %v679, %v764
        %v769 = vadd.f32 %v680, %v766
        %770 = vrot.lane.b32.xlu0 %v478, 18
        %v771 = vpop.permute.xlu0 %770
        %v772 = vrot.slane %v771, 4
        %vm773 = vcmask 146432
        %v774 = vsel %vm773, %v772, %v771
        %v777 = vmul.f32 %v250, %v774
        %v778 = vmul.f32 %v251, %v772
        %v781 = vcombine.high %v777, %v777
        %782 = vrot.lane.b32.xlu0 %v777, 110
        %v783 = vpop.permute.xlu0 %782
        %784 = vrot.lane.b32.xlu0 %v781, 110
        %v785 = vpop.permute.xlu0 %784
        %786 = vrot.lane.b32.xlu0 %v778, 110
        %v787 = vpop.permute.xlu0 %786
        %vm788 = vcmask 900096
        %v789 = vsel %vm788, %v783, %v785
        %v790 = vsel %vm788, %v785, %v787
        %v792 = vsel %vm298, %v257, 0
        %v794 = vsel %vm302, %v789, 0
        %v796 = vsel %vm302, %v790, 0
        %798 = vmatprep.subr.mxu0 %v796
        %799 = vmatpush1.msra.mxu0 %v794
        %800 = vmatprep.subr.mxu0 0.0
        %801 = vmatpush1.msra.mxu0 0.0
        %802 = vmatprep.subr.mxu0 0.0
        %803 = vmatpush1.msra.mxu0 0.0
        %804 = vmatprep.subr.mxu0 0.0
        %805 = vmatpush1.msra.mxu0 0.0
        %806 = vmatprep.subr.mxu0 0.0
        %807 = vmatpush1.msra.mxu0 0.0
        %808 = vmatprep.subr.mxu0 0.0
        %809 = vmatpush1.msra.mxu0 0.0
        %810 = vmatprep.subr.mxu0 0.0
        %811 = vmatpush1.msra.mxu0 0.0
        %812 = vmatprep.subr.mxu0 0.0
        %813 = vmatpush1.msra.mxu0 0.0
        %814 = vmatprep.subr.mxu0 0.0
        %815 = vmatpush1.msra.mxu0 0.0
        %816 = vmatprep.subr.mxu0 0.0
        %817 = vmatpush1.msra.mxu0 0.0
        %818 = vmatprep.subr.mxu0 0.0
        %819 = vmatpush1.msra.mxu0 0.0
        %820 = vmatprep.subr.mxu0 0.0
        %821 = vmatpush1.msra.mxu0 0.0
        %822 = vmatprep.subr.mxu0 0.0
        %823 = vmatpush1.msra.mxu0 0.0
        %824 = vmatprep.subr.mxu0 0.0
        %825 = vmatpush1.msra.mxu0 0.0
        %826 = vmatprep.subr.mxu0 0.0
        %827 = vmatpush1.msra.mxu0 0.0
        %828 = vmatprep.subr.mxu0 0.0
        %829 = vmatpush1.msra.mxu0 0.0
        %830 = vmatprep.subr.mxu0 0.0
        %831 = vmatpush1.msra.mxu0 0.0
        %832 = vmatprep.subr.mxu0 0.0
        %833 = vmatpush1.msra.mxu0 0.0
        %834 = vmatprep.subr.mxu0 0.0
        %835 = vmatpush1.msra.mxu0 0.0
        %836 = vmatprep.subr.mxu0 0.0
        %837 = vmatpush1.msra.mxu0 0.0
        %838 = vmatprep.subr.mxu0 0.0
        %839 = vmatpush1.msra.mxu0 0.0
        %840 = vmatprep.subr.mxu0 0.0
        %841 = vmatpush1.msra.mxu0 0.0
        %842 = vmatprep.subr.mxu0 0.0
        %843 = vmatpush1.msra.mxu0 0.0
        %844 = vmatprep.subr.mxu0 0.0
        %845 = vmatpush1.msra.mxu0 0.0
        %846 = vmatprep.subr.mxu0 0.0
        %847 = vmatpush1.msra.mxu0 0.0
        %848 = vmatprep.subr.mxu0 0.0
        %849 = vmatpush1.msra.mxu0 0.0
        %850 = vmatprep.subr.mxu0 0.0
        %851 = vmatpush1.msra.mxu0 0.0
        %852 = vmatprep.subr.mxu0 0.0
        %853 = vmatpush1.msra.mxu0 0.0
        %854 = vmatprep.subr.mxu0 0.0
        %855 = vmatpush1.msra.mxu0 0.0
        %856 = vmatprep.subr.mxu0 0.0
        %857 = vmatpush1.msra.mxu0 0.0
        %858 = vmatprep.subr.mxu0 0.0
        %859 = vmatpush1.msra.mxu0 0.0
        %860 = vmatprep.subr.mxu0 0.0
        %861 = vmatpush1.msra.mxu0 0.0
        %862 = vmatprep.mubr.f32.mxu0 0.0
        %863 = vmatmul.mubr.f32.gmra.mrb[0].mxu0 %v792
        %v864 = vpop.f32.mrb[0].mxu0
        %v865 = vadd.f32 0.0, %v864
        %v866 = vpop.f32.mrb[0].mxu0
        %v867 = vadd.f32 0.0, %v866
        %868 = vdwg.mxu0
        %v869 = vadd.f32 %v768, %v865
        %v870 = vadd.f32 %v769, %v867
        %871 = vrot.lane.b32.xlu0 %v283, 32
        %v872 = vpop.permute.xlu0 %871
        %v873 = vrot.slane %v872, 4
        %vm874 = vcmask 261120
        %v875 = vsel %vm874, %v873, %v872
        %v878 = vmul.f32 %v250, %v875
        %v879 = vmul.f32 %v251, %v873
        %v882 = vcombine.high %v878, %v878
        %883 = vrot.lane.b32.xlu0 %v878, 96
        %v884 = vpop.permute.xlu0 %883
        %885 = vrot.lane.b32.xlu0 %v882, 96
        %v886 = vpop.permute.xlu0 %885
        %887 = vrot.lane.b32.xlu0 %v879, 96
        %v888 = vpop.permute.xlu0 %887
        %vm889 = vcmask 785408
        %v890 = vsel %vm889, %v884, %v886
        %v891 = vsel %vm889, %v886, %v888
        %v893 = vsel %vm298, %v258, 0
        %v895 = vsel %vm302, %v890, 0
        %v897 = vsel %vm302, %v891, 0
        %899 = vmatprep.subr.mxu0 %v897
        %900 = vmatpush1.msra.mxu0 %v895
        %901 = vmatprep.subr.mxu0 0.0
        %902 = vmatpush1.msra.mxu0 0.0
        %903 = vmatprep.subr.mxu0 0.0
        %904 = vmatpush1.msra.mxu0 0.0
        %905 = vmatprep.subr.mxu0 0.0
        %906 = vmatpush1.msra.mxu0 0.0
        %907 = vmatprep.subr.mxu0 0.0
        %908 = vmatpush1.msra.mxu0 0.0
        %909 = vmatprep.subr.mxu0 0.0
        %910 = vmatpush1.msra.mxu0 0.0
        %911 = vmatprep.subr.mxu0 0.0
        %912 = vmatpush1.msra.mxu0 0.0
        %913 = vmatprep.subr.mxu0 0.0
        %914 = vmatpush1.msra.mxu0 0.0
        %915 = vmatprep.subr.mxu0 0.0
        %916 = vmatpush1.msra.mxu0 0.0
        %917 = vmatprep.subr.mxu0 0.0
        %918 = vmatpush1.msra.mxu0 0.0
        %919 = vmatprep.subr.mxu0 0.0
        %920 = vmatpush1.msra.mxu0 0.0
        %921 = vmatprep.subr.mxu0 0.0
        %922 = vmatpush1.msra.mxu0 0.0
        %923 = vmatprep.subr.mxu0 0.0
        %924 = vmatpush1.msra.mxu0 0.0
        %925 = vmatprep.subr.mxu0 0.0
        %926 = vmatpush1.msra.mxu0 0.0
        %927 = vmatprep.subr.mxu0 0.0
        %928 = vmatpush1.msra.mxu0 0.0
        %929 = vmatprep.subr.mxu0 0.0
        %930 = vmatpush1.msra.mxu0 0.0
        %931 = vmatprep.subr.mxu0 0.0
        %932 = vmatpush1.msra.mxu0 0.0
        %933 = vmatprep.subr.mxu0 0.0
        %934 = vmatpush1.msra.mxu0 0.0
        %935 = vmatprep.subr.mxu0 0.0
        %936 = vmatpush1.msra.mxu0 0.0
        %937 = vmatprep.subr.mxu0 0.0
        %938 = vmatpush1.msra.mxu0 0.0
        %939 = vmatprep.subr.mxu0 0.0
        %940 = vmatpush1.msra.mxu0 0.0
        %941 = vmatprep.subr.mxu0 0.0
        %942 = vmatpush1.msra.mxu0 0.0
        %943 = vmatprep.subr.mxu0 0.0
        %944 = vmatpush1.msra.mxu0 0.0
        %945 = vmatprep.subr.mxu0 0.0
        %946 = vmatpush1.msra.mxu0 0.0
        %947 = vmatprep.subr.mxu0 0.0
        %948 = vmatpush1.msra.mxu0 0.0
        %949 = vmatprep.subr.mxu0 0.0
        %950 = vmatpush1.msra.mxu0 0.0
        %951 = vmatprep.subr.mxu0 0.0
        %952 = vmatpush1.msra.mxu0 0.0
        %953 = vmatprep.subr.mxu0 0.0
        %954 = vmatpush1.msra.mxu0 0.0
        %955 = vmatprep.subr.mxu0 0.0
        %956 = vmatpush1.msra.mxu0 0.0
        %957 = vmatprep.subr.mxu0 0.0
        %958 = vmatpush1.msra.mxu0 0.0
        %959 = vmatprep.subr.mxu0 0.0
        %960 = vmatpush1.msra.mxu0 0.0
        %961 = vmatprep.subr.mxu0 0.0
        %962 = vmatpush1.msra.mxu0 0.0
        %963 = vmatprep.mubr.f32.mxu0 0.0
        %964 = vmatmul.mubr.f32.gmra.mrb[0].mxu0 %v893
        %v965 = vpop.f32.mrb[0].mxu0
        %v966 = vadd.f32 0.0, %v965
        %v967 = vpop.f32.mrb[0].mxu0
        %v968 = vadd.f32 0.0, %v967
        %969 = vdwg.mxu0
        %v970 = vadd.f32 %v869, %v966
        %v971 = vadd.f32 %v870, %v968
        %972 = vrot.lane.b32.xlu0 %v250, 95
        %v973 = vpop.permute.xlu0 %972
        %974 = vrot.lane.b32.xlu0 %v288, 95
        %v975 = vpop.permute.xlu0 %974
        %976 = vrot.lane.b32.xlu0 %v251, 95
        %v977 = vpop.permute.xlu0 %976
        %vm978 = vcmask 777216
        %v979 = vsel %vm978, %v973, %v975
        %v980 = vsel %vm978, %v975, %v977
        %v982 = vsel %vm298, %v259, 0
        %v984 = vsel %vm302, %v979, 0
        %v986 = vsel %vm302, %v980, 0
        %988 = vmatprep.subr.mxu0 %v986
        %989 = vmatpush1.msra.mxu0 %v984
        %990 = vmatprep.subr.mxu0 0.0
        %991 = vmatpush1.msra.mxu0 0.0
        %992 = vmatprep.subr.mxu0 0.0
        %993 = vmatpush1.msra.mxu0 0.0
        %994 = vmatprep.subr.mxu0 0.0
        %995 = vmatpush1.msra.mxu0 0.0
        %996 = vmatprep.subr.mxu0 0.0
        %997 = vmatpush1.msra.mxu0 0.0
        %998 = vmatprep.subr.mxu0 0.0
        %999 = vmatpush1.msra.mxu0 0.0
        %1000 = vmatprep.subr.mxu0 0.0
        %1001 = vmatpush1.msra.mxu0 0.0
        %1002 = vmatprep.subr.mxu0 0.0
        %1003 = vmatpush1.msra.mxu0 0.0
        %1004 = vmatprep.subr.mxu0 0.0
        %1005 = vmatpush1.msra.mxu0 0.0
        %1006 = vmatprep.subr.mxu0 0.0
        %1007 = vmatpush1.msra.mxu0 0.0
        %1008 = vmatprep.subr.mxu0 0.0
        %1009 = vmatpush1.msra.mxu0 0.0
        %1010 = vmatprep.subr.mxu0 0.0
        %1011 = vmatpush1.msra.mxu0 0.0
        %1012 = vmatprep.subr.mxu0 0.0
        %1013 = vmatpush1.msra.mxu0 0.0
        %1014 = vmatprep.subr.mxu0 0.0
        %1015 = vmatpush1.msra.mxu0 0.0
        %1016 = vmatprep.subr.mxu0 0.0
        %1017 = vmatpush1.msra.mxu0 0.0
        %1018 = vmatprep.subr.mxu0 0.0
        %1019 = vmatpush1.msra.mxu0 0.0
        %1020 = vmatprep.subr.mxu0 0.0
        %1021 = vmatpush1.msra.mxu0 0.0
        %1022 = vmatprep.subr.mxu0 0.0
        %1023 = vmatpush1.msra.mxu0 0.0
        %1024 = vmatprep.subr.mxu0 0.0
        %1025 = vmatpush1.msra.mxu0 0.0
        %1026 = vmatprep.subr.mxu0 0.0
        %1027 = vmatpush1.msra.mxu0 0.0
        %1028 = vmatprep.subr.mxu0 0.0
        %1029 = vmatpush1.msra.mxu0 0.0
        %1030 = vmatprep.subr.mxu0 0.0
        %1031 = vmatpush1.msra.mxu0 0.0
        %1032 = vmatprep.subr.mxu0 0.0
        %1033 = vmatpush1.msra.mxu0 0.0
        %1034 = vmatprep.subr.mxu0 0.0
        %1035 = vmatpush1.msra.mxu0 0.0
        %1036 = vmatprep.subr.mxu0 0.0
        %1037 = vmatpush1.msra.mxu0 0.0
        %1038 = vmatprep.subr.mxu0 0.0
        %1039 = vmatpush1.msra.mxu0 0.0
        %1040 = vmatprep.subr.mxu0 0.0
        %1041 = vmatpush1.msra.mxu0 0.0
        %1042 = vmatprep.subr.mxu0 0.0
        %1043 = vmatpush1.msra.mxu0 0.0
        %1044 = vmatprep.subr.mxu0 0.0
        %1045 = vmatpush1.msra.mxu0 0.0
        %1046 = vmatprep.subr.mxu0 0.0
        %1047 = vmatpush1.msra.mxu0 0.0
        %1048 = vmatprep.subr.mxu0 0.0
        %1049 = vmatpush1.msra.mxu0 0.0
        %1050 = vmatprep.subr.mxu0 0.0
        %1051 = vmatpush1.msra.mxu0 0.0
        %1052 = vmatprep.mubr.f32.mxu0 0.0
        %1053 = vmatmul.mubr.f32.gmra.mrb[0].mxu0 %v982
        %v1054 = vpop.f32.mrb[0].mxu0
        %v1055 = vadd.f32 0.0, %v1054
        %v1056 = vpop.f32.mrb[0].mxu0
        %v1057 = vadd.f32 0.0, %v1056
        %1058 = vdwg.mxu0
        %v1059 = vadd.f32 %v970, %v1055
        %v1060 = vadd.f32 %v971, %v1057
        %1061 = vrot.lane.b32.xlu0 %v478, 34
        %v1062 = vpop.permute.xlu0 %1061
        %v1063 = vrot.slane %v1062, 4
        %vm1064 = vcmask 277504
        %v1065 = vsel %vm1064, %v1063, %v1062
        %v1068 = vmul.f32 %v250, %v1065
        %v1069 = vmul.f32 %v251, %v1063
        %v1072 = vcombine.high %v1068, %v1068
        %1073 = vrot.lane.b32.xlu0 %v1068, 94
        %v1074 = vpop.permute.xlu0 %1073
        %1075 = vrot.lane.b32.xlu0 %v1072, 94
        %v1076 = vpop.permute.xlu0 %1075
        %1077 = vrot.lane.b32.xlu0 %v1069, 94
        %v1078 = vpop.permute.xlu0 %1077
        %vm1079 = vcmask 769024
        %v1080 = vsel %vm1079, %v1074, %v1076
        %v1081 = vsel %vm1079, %v1076, %v1078
        %v1083 = vsel %vm298, %v260, 0
        %v1085 = vsel %vm302, %v1080, 0
        %v1087 = vsel %vm302, %v1081, 0
        %1089 = vmatprep.subr.mxu0 %v1087
        %1090 = vmatpush1.msra.mxu0 %v1085
        %1091 = vmatprep.subr.mxu0 0.0
        %1092 = vmatpush1.msra.mxu0 0.0
        %1093 = vmatprep.subr.mxu0 0.0
        %1094 = vmatpush1.msra.mxu0 0.0
        %1095 = vmatprep.subr.mxu0 0.0
        %1096 = vmatpush1.msra.mxu0 0.0
        %1097 = vmatprep.subr.mxu0 0.0
        %1098 = vmatpush1.msra.mxu0 0.0
        %1099 = vmatprep.subr.mxu0 0.0
        %1100 = vmatpush1.msra.mxu0 0.0
        %1101 = vmatprep.subr.mxu0 0.0
        %1102 = vmatpush1.msra.mxu0 0.0
        %1103 = vmatprep.subr.mxu0 0.0
        %1104 = vmatpush1.msra.mxu0 0.0
        %1105 = vmatprep.subr.mxu0 0.0
        %1106 = vmatpush1.msra.mxu0 0.0
        %1107 = vmatprep.subr.mxu0 0.0
        %1108 = vmatpush1.msra.mxu0 0.0
        %1109 = vmatprep.subr.mxu0 0.0
        %1110 = vmatpush1.msra.mxu0 0.0
        %1111 = vmatprep.subr.mxu0 0.0
        %1112 = vmatpush1.msra.mxu0 0.0
        %1113 = vmatprep.subr.mxu0 0.0
        %1114 = vmatpush1.msra.mxu0 0.0
        %1115 = vmatprep.subr.mxu0 0.0
        %1116 = vmatpush1.msra.mxu0 0.0
        %1117 = vmatprep.subr.mxu0 0.0
        %1118 = vmatpush1.msra.mxu0 0.0
        %1119 = vmatprep.subr.mxu0 0.0
        %1120 = vmatpush1.msra.mxu0 0.0
        %1121 = vmatprep.subr.mxu0 0.0
        %1122 = vmatpush1.msra.mxu0 0.0
        %1123 = vmatprep.subr.mxu0 0.0
        %1124 = vmatpush1.msra.mxu0 0.0
        %1125 = vmatprep.subr.mxu0 0.0
        %1126 = vmatpush1.msra.mxu0 0.0
        %1127 = vmatprep.subr.mxu0 0.0
        %1128 = vmatpush1.msra.mxu0 0.0
        %1129 = vmatprep.subr.mxu0 0.0
        %1130 = vmatpush1.msra.mxu0 0.0
        %1131 = vmatprep.subr.mxu0 0.0
        %1132 = vmatpush1.msra.mxu0 0.0
        %1133 = vmatprep.subr.mxu0 0.0
        %1134 = vmatpush1.msra.mxu0 0.0
        %1135 = vmatprep.subr.mxu0 0.0
        %1136 = vmatpush1.msra.mxu0 0.0
        %1137 = vmatprep.subr.mxu0 0.0
        %1138 = vmatpush1.msra.mxu0 0.0
        %1139 = vmatprep.subr.mxu0 0.0
        %1140 = vmatpush1.msra.mxu0 0.0
        %1141 = vmatprep.subr.mxu0 0.0
        %1142 = vmatpush1.msra.mxu0 0.0
        %1143 = vmatprep.subr.mxu0 0.0
        %1144 = vmatpush1.msra.mxu0 0.0
        %1145 = vmatprep.subr.mxu0 0.0
        %1146 = vmatpush1.msra.mxu0 0.0
        %1147 = vmatprep.subr.mxu0 0.0
        %1148 = vmatpush1.msra.mxu0 0.0
        %1149 = vmatprep.subr.mxu0 0.0
        %1150 = vmatpush1.msra.mxu0 0.0
        %1151 = vmatprep.subr.mxu0 0.0
        %1152 = vmatpush1.msra.mxu0 0.0
        %1153 = vmatprep.mubr.f32.mxu0 0.0
        %1154 = vmatmul.mubr.f32.gmra.mrb[0].mxu0 %v1083
        %v1155 = vpop.f32.mrb[0].mxu0
        %v1156 = vadd.f32 0.0, %v1155
        %v1157 = vpop.f32.mrb[0].mxu0
        %v1158 = vadd.f32 0.0, %v1157
        %1159 = vdwg.mxu0
        %v1160 = vadd.f32 %v1059, %v1156
        %v1161 = vadd.f32 %v1060, %v1158
        %v1162 = vld [vmem:[%s2] sm:$0xff]
        %1164 = vset.pattern.permute.xlu0 0
        %1165 = vperm.xlu0 %1164, %v1162
        %v1166 = vpop.permute.xlu0 %1165
        %v1168 = vadd.f32 %v1160, %v1166
        %v1169 = vadd.f32 %v1161, %v1166
        %v1170 = vadd.f32 %v1168, %v1169
        %1171 = vadd.xlane.f32.xlu0 %v1170
        %v1172 = vpop.xlane.xlu0 %1171
        %v1173 = vrcp.pop 256.0
        %v1174 = vmul.f32 %v1172, %v1173
        %v1175 = vld [vmem:[%s4] sm:$0xff]
        %v1176 = vmul.f32 %v1175, %v1174
        %v1177 = vsel %vm482, %v1176, 0.0
        %v1178 = vrot.slane %v1177, 4
        %v1179 = vadd.f32 %v1177, %v1178
        %v1180 = vrot.slane %v1179, 2
        %v1181 = vadd.f32 %v1179, %v1180
        %v1182 = vrot.slane %v1181, 1
        %v1183 = vadd.f32 %v1181, %v1182
        %v1184 = vmax.f32 %v1183, 0.0
        %v1185 = vld [vmem:[%s5] sm:$0xff]
        %v1186 = vmul.f32 %v1185, %v1184
        %v1187 = vsel %vm482, %v1186, 0.0
        %1188 = vadd.xlane.f32.xlu0 %v1187
        %v1189 = vpop.xlane.xlu0 %1188
        %v1190 = vxor.u32 %v1189, 2147483648
        %v1191 = vmul.f32 %v1190, 1.442695
        %v1192 = vpow.pop %v1191
        %v1193 = vadd.f32 %v1192, 1.0
        %v1194 = vrcp.pop %v1193
        %v1195 = vmul.f32 1.0, %v1194
        %v1196 = vmul.f32 %v1168, %v1195
        %v1197 = vmul.f32 %v1169, %v1195
        %1198 = vst [vmem:[%s244] sm:$0xff] %v1196
        %1199 = vst [vmem:[%s244 + $0x8] sm:$0xff] %v1197
        %s1200 = sand.u32 %s159, 1
        %s1201 = scalar_lea.sflag [#allocation3], %s1200
        %s1202 = sand.u32 %s159, 1
        %s1203 = smul.addr %s1202, 16
        %s1204 = scalar_lea.vmem [#allocation2], %s1203
        // Predicated region
        $region45: #{tpu_custom_call.1} parent=43 // pred_check
          %p1205 = pneg %p169
        $region46: #{tpu_custom_call.1} parent=43 // pred_check_branch
          %1207 = sbr.rel (%p1205) target = $region48
        $region47: #{tpu_custom_call.1} parent=43 // pred_region
          %s1209 = ssub.s32 256, 256
          %1210 = vsyncadd %s1201, %s1209
          %s1211 = smul.addr %s20, 2
          %s1212 = smul.addr %s1211, 128
          %s1213 = scalar_lea.hbm %s6, %s1212
          %s1215 = sshll.u32 %s1204, 4
          %s1216 = int_to_ptr.vmem [resolvable:$true] %s1215
          %1218 = dma.vmem_to_hbm [thread:$0]  %s1216, 256, %s1213, %s1201
        $region48: #{tpu_custom_call.1} parent=43 // pred_fallthru
          _
      $region44: #{tpu_custom_call.1} parent=5 // pred_fallthru
        _
      %p1219 = scmp.le.s32.totalorder 2, %s15
      // Predicated region
      $region49: #{tpu_custom_call.1} parent=5 // pred_check
        %p1220 = pneg %p1219
      $region50: #{tpu_custom_call.1} parent=5 // pred_check_branch
        %1222 = sbr.rel (%p1220) target = $region52
      $region51: #{tpu_custom_call.1} parent=5 // pred_region
        %s1223 = ssub.s32 %s15, 2
        // Predicated region
        $region53: #{tpu_custom_call.1} parent=51 // pred_check
          %p1224 = pneg %p175
        $region54: #{tpu_custom_call.1} parent=51 // pred_check_branch
          %1226 = sbr.rel (%p1224) target = $region56
        $region55: #{tpu_custom_call.1} parent=51 // pred_region
          %s1227 = sand.u32 %s160, 1
          %s1228 = scalar_lea.sflag [#allocation3], %s1227
          %s1229 = sand.u32 %s160, 1
          %s1230 = smul.addr %s1229, 16
          %s1231 = scalar_lea.vmem [#allocation2], %s1230
          %1232 = dma.done %s1228, 256
        $region56: #{tpu_custom_call.1} parent=51 // pred_fallthru
          _
      $region52: #{tpu_custom_call.1} parent=5 // pred_fallthru
        _
    $region6: #{tpu_custom_call.1} parent=1 // loop_footer
      %s19 = sadd.s32 1, %s15
    $region7: #{tpu_custom_call.1} parent=1 // loop_footer_branch
      %14 = sbr.rel target = $region3
    $region8: #{tpu_custom_call.1} parent=1 // loop_exit
      _
    %1233 = vsyncpa [#allocation3], 1
    %s1234 = scalar_lea.sflag [#allocation3], 1
    %1235 = vsyncpa %s1234, 1

</llo_original>
